<compile_context>
chip_gen: v5e
topology: v5e:2x2
jax: 0.10.0
libtpu: 0.0.40
codegen_flags: <defaults>
</compile_context>

<pallas_src>
import functools

import jax
import jax.numpy as jnp
from jax import lax
from jax.experimental import pallas as pl
from jax.experimental.pallas import tpu as pltpu

LANE = 128      # TPU lane width (last dim)
SUBLANE = 8     # TPU sublane width (second-to-last dim)
MAX_T_CHUNK = 32  # timesteps per grid step; small enough for any VMEM budget here


# ---------------------------------------------------------------------------
# Kernel: one chunk of T_CHUNK recurrent steps per grid iteration.
#   cx_ref   : [T_CHUNK, Bp, 128] padded cat(category, input) chunk    (streamed)
#   h0_ref   : [Bp, 128] padded initial state (ones lane at col 127)   (resident)
#   w1cx_ref : [128, 128] fused i2h/i2o weights, (category,input) rows (resident)
#   w1h_ref  : [128, 128] fused i2h/i2o weights, hidden rows + biases  (resident)
#   w2_ref   : [128, 128] o2o weights + bias row                       (resident)
#   out_ref  : [T_CHUNK, Bp, 128] per-step logits (cols :O valid)      (streamed out)
#   hid_ref  : [Bp, 128] carried state = stage1 (cols :H hidden, col 127 = 1)
#   s1_scr   : [T_CHUNK*Bp, 128] VMEM scratch holding u then stage1
# ---------------------------------------------------------------------------
def rnn_chunk_kernel(cx_ref, h0_ref, w1cx_ref, w1h_ref, w2_ref,
                     out_ref, hid_ref, s1_scr, *, t_chunk, bp, seq_len):
    # Initialize the recurrent state from h0 on the first chunk only.
    @pl.when(pl.program_id(0) == 0)
    def _init():
        hid_ref[...] = h0_ref[...]

    wdt = w1cx_ref.dtype  # MXU operand dtype (f32 or bf16); accumulation is f32

    # ---- Pre-pass (off the serial chain): whole-chunk non-recurrent matmul.
    # u[t] = cx[t] @ W1_cx for all t at once -> near-full MXU occupancy.
    cx_flat = cx_ref[...].reshape(t_chunk * bp, LANE)
    s1_scr[...] = jnp.dot(cx_flat.astype(wdt), w1cx_ref[...],
                          preferred_element_type=jnp.float32)

    w1h = w1h_ref[...]                       # hoisted VMEM load (resident weight)
    chunk_base = pl.program_id(0) * t_chunk  # global timestep of this chunk's start

    # ---- Serial recurrence: only stage1[t] = u[t] + state @ W1_h stays sequential.
    # Biases arrive via the ones lane (state col 127 == 1); w1h row/col 127 keep
    # that invariant so stage1 also carries a 1 in col 127.
    def step(t, state):
        row = pl.multiple_of(t * bp, bp)
        stage1 = s1_scr[pl.ds(row, bp), :] + jnp.dot(
            state.astype(wdt), w1h, preferred_element_type=jnp.float32)
        s1_scr[pl.ds(row, bp), :] = stage1
        valid = (chunk_base + t) < seq_len   # mask padded tail steps of last chunk
        return jnp.where(valid, stage1, state)

    state = lax.fori_loop(0, t_chunk, step, hid_ref[...], unroll=True)
    hid_ref[...] = state                     # carried state stays f32

    # ---- Post-pass (off the serial chain): batched o2o projection (+ bias row).
    out_flat = jnp.dot(s1_scr[...].astype(wdt), w2_ref[...],
                       preferred_element_type=jnp.float32)
    out_ref[...] = out_flat.reshape(t_chunk, bp, LANE)


# ---------------------------------------------------------------------------
# One-time parameter packing (hoisted out of the hot path).
# ---------------------------------------------------------------------------
def prepare_params(params, n_categories, input_size, hidden_size, output_size,
                   compute_dtype=jnp.float32):
    H, O = hidden_size, output_size
    Ccx = n_categories + input_size                # (category, input) feature count
    HO = H + O
    assert Ccx <= LANE and H <= LANE - 1 and HO <= LANE - 1, "shapes exceed one lane tile"

    w_i2h = params["w_i2h"]                        # [H, Ccx + H]
    w_i2o = params["w_i2o"]                        # [O, Ccx + H]
    w_o2o = params["w_o2o"]                        # [O, H + O]

    # Stage-1 fused weight, (category,input) segment: [Ccx, H+O]
    w1_cx = jnp.concatenate([w_i2h[:, :Ccx].T, w_i2o[:, :Ccx].T], axis=1)
    # Stage-1 fused weight, hidden segment: [H, H+O]
    w1_h = jnp.concatenate([w_i2h[:, Ccx:].T, w_i2o[:, Ccx:].T], axis=1)
    b1 = jnp.concatenate([params["b_i2h"], params["b_i2o"]])   # [H+O]
    w2 = w_o2o.T                                               # [H+O, O]
    b2 = params["b_o2o"]                                       # [O]

    # Zero-pad to 128x128, fold biases via the ones lane (column LANE-1 of state).
    w1cx_p = jnp.zeros((LANE, LANE), jnp.float32).at[:Ccx, :HO].set(w1_cx)
    w1h_p = jnp.zeros((LANE, LANE), jnp.float32).at[:H, :HO].set(w1_h)
    w1h_p = w1h_p.at[LANE - 1, :HO].set(b1)        # bias row (picked up by ones lane)
    w1h_p = w1h_p.at[LANE - 1, LANE - 1].set(1.0)  # keep ones-lane invariant in stage1
    w2_p = jnp.zeros((LANE, LANE), jnp.float32).at[:HO, :O].set(w2)
    w2_p = w2_p.at[LANE - 1, :O].set(b2)           # o2o bias row
    return {"w1_cx": w1cx_p.astype(compute_dtype),
            "w1_h": w1h_p.astype(compute_dtype),
            "w2": w2_p.astype(compute_dtype)}


# ---------------------------------------------------------------------------
# Sequence forward: T recurrent steps in a single pallas_call, chunked grid.
#   category_seq: [T, B, n_categories]   input_seq: [T, B, input_size]
#   hidden0:      [B, H]
# Returns (outputs [T, B, O], final hidden [B, H]).
# ---------------------------------------------------------------------------
def rnn_forward_seq(category_seq, input_seq, hidden0, packed,
                    hidden_size, output_size, t_chunk=MAX_T_CHUNK):
    T, B = category_seq.shape[0], category_seq.shape[1]
    H, O = hidden_size, output_size
    Ccx = category_seq.shape[2] + input_seq.shape[2]
    Bp = max(SUBLANE, ((B + SUBLANE - 1) // SUBLANE) * SUBLANE)
    t_chunk = max(1, min(t_chunk, T))
    n_chunks = (T + t_chunk - 1) // t_chunk
    Tp = n_chunks * t_chunk

    # One concat for the whole sequence, one-time zero padding to lane-dense tiles.
    cx = jnp.concatenate([category_seq, input_seq], axis=2)               # [T, B, Ccx]
    cx_p = jnp.zeros((Tp, Bp, LANE), jnp.float32).at[:T, :B, :Ccx].set(cx)
    h0_p = jnp.zeros((Bp, LANE), jnp.float32).at[:B, :H].set(hidden0)
    h0_p = h0_p.at[:, LANE - 1].set(1.0)                                  # ones lane

    kernel = functools.partial(rnn_chunk_kernel, t_chunk=t_chunk, bp=Bp, seq_len=T)
    out_p, hid_p = pl.pallas_call(
        kernel,
        out_shape=(jax.ShapeDtypeStruct((Tp, Bp, LANE), jnp.float32),
                   jax.ShapeDtypeStruct((Bp, LANE), jnp.float32)),
        grid_spec=pltpu.PrefetchScalarGridSpec(
            num_scalar_prefetch=0,
            grid=(n_chunks,),
            in_specs=[
                pl.BlockSpec((t_chunk, Bp, LANE), lambda c: (c, 0, 0)),   # streamed cx chunk
                pl.BlockSpec((Bp, LANE), lambda c: (0, 0)),               # h0    (resident)
                pl.BlockSpec((LANE, LANE), lambda c: (0, 0)),             # w1_cx (resident)
                pl.BlockSpec((LANE, LANE), lambda c: (0, 0)),             # w1_h  (resident)
                pl.BlockSpec((LANE, LANE), lambda c: (0, 0)),             # w2    (resident)
            ],
            out_specs=(
                pl.BlockSpec((t_chunk, Bp, LANE), lambda c: (c, 0, 0)),   # logits chunk
                pl.BlockSpec((Bp, LANE), lambda c: (0, 0)),               # final state
            ),
            scratch_shapes=[pltpu.VMEM((t_chunk * Bp, LANE), jnp.float32)],
        ),
        input_output_aliases={1: 1},                                      # h0 <-> final state
        compiler_params=pltpu.CompilerParams(
            dimension_semantics=("arbitrary",)),                          # true recurrence
    )(cx_p, h0_p, packed["w1_cx"], packed["w1_h"], packed["w2"])

    return out_p[:T, :B, :O], hid_p[:B, :H]


def rnn_forward(category, inp, hidden, packed, hidden_size, output_size):
    """Single step, matching the PyTorch forward(category, input, hidden) exactly."""
    out_seq, hid = rnn_forward_seq(category[None], inp[None], hidden,
                                   packed, hidden_size, output_size, t_chunk=1)
    return out_seq[0], hid


# ---------------------------------------------------------------------------
# Init + pure-JAX reference (mirrors the PyTorch module).
# ---------------------------------------------------------------------------
def init_params(key, n_categories, input_size, hidden_size, output_size):
    C = n_categories + input_size + hidden_size
    ks = jax.random.split(key, 6)
    scale_a = 1.0 / jnp.sqrt(C)
    scale_b = 1.0 / jnp.sqrt(hidden_size + output_size)
    return {
        "w_i2h": jax.random.uniform(ks[0], (hidden_size, C), jnp.float32, -scale_a, scale_a),
        "b_i2h": jax.random.uniform(ks[1], (hidden_size,), jnp.float32, -scale_a, scale_a),
        "w_i2o": jax.random.uniform(ks[2], (output_size, C), jnp.float32, -scale_a, scale_a),
        "b_i2o": jax.random.uniform(ks[3], (output_size,), jnp.float32, -scale_a, scale_a),
        "w_o2o": jax.random.uniform(ks[4], (output_size, hidden_size + output_size),
                                    jnp.float32, -scale_b, scale_b),
        "b_o2o": jax.random.uniform(ks[5], (output_size,), jnp.float32, -scale_b, scale_b),
    }


def rnn_forward_ref(category, inp, hidden, params):
    combined = jnp.concatenate([category, inp, hidden], axis=1)
    h = combined @ params["w_i2h"].T + params["b_i2h"]
    o = combined @ params["w_i2o"].T + params["b_i2o"]
    oc = jnp.concatenate([h, o], axis=1)
    out = oc @ params["w_o2o"].T + params["b_o2o"]
    return out, h


def run_ref_seq(category_seq, input_seq, hidden0, params):
    h = hidden0
    outs = []
    for t in range(category_seq.shape[0]):
        o, h = rnn_forward_ref(category_seq[t], input_seq[t], h, params)
        outs.append(o)
    return jnp.stack(outs), h


if __name__ == "__main__":
    batch = 2
    n_categories = 4
    input_size = 8
    hidden_size = 32
    output_size = 8
    seq_len = 8

    key = jax.random.PRNGKey(0)
    k_par, k_cat, k_in, k_cat2, k_in2 = jax.random.split(key, 5)

    params = init_params(k_par, n_categories, input_size, hidden_size, output_size)
    packed = prepare_params(params, n_categories, input_size, hidden_size, output_size)

    category_seq = jax.random.normal(k_cat, (seq_len, batch, n_categories), jnp.float32)
    input_seq = jax.random.normal(k_in, (seq_len, batch, input_size), jnp.float32)
    hidden0 = jnp.zeros((batch, hidden_size), jnp.float32)          # init_hidden()

    # --- fused multi-step kernel (single chunk at T=8) -----------------------
    run_seq = jax.jit(lambda c, x, h, p: rnn_forward_seq(c, x, h, p,
                                                         hidden_size, output_size))
    outs, hid_T = run_seq(category_seq, input_seq, hidden0, packed)
    outs = jax.block_until_ready(outs)
    hid_T = jax.block_until_ready(hid_T)

    outs_ref, h_ref = run_ref_seq(category_seq, input_seq, hidden0, params)
    assert outs.shape == (seq_len, batch, output_size)
    assert hid_T.shape == (batch, hidden_size)
    assert jnp.allclose(outs, outs_ref, atol=1e-4, rtol=1e-5)
    assert jnp.allclose(hid_T, h_ref, atol=1e-4, rtol=1e-5)

    # --- longer sequence: multiple chunks + masked tail (T=19, chunk=8) ------
    T2 = 19
    cat2 = jax.random.normal(k_cat2, (T2, batch, n_categories), jnp.float32)
    in2 = jax.random.normal(k_in2, (T2, batch, input_size), jnp.float32)
    run_seq_chunked = jax.jit(lambda c, x, h, p: rnn_forward_seq(
        c, x, h, p, hidden_size, output_size, t_chunk=8))
    outs2, hid2 = run_seq_chunked(cat2, in2, hidden0, packed)
    outs2 = jax.block_until_ready(outs2)
    outs2_ref, h2_ref = run_ref_seq(cat2, in2, hidden0, params)
    assert jnp.allclose(outs2, outs2_ref, atol=1e-4, rtol=1e-5)
    assert jnp.allclose(hid2, h2_ref, atol=1e-4, rtol=1e-5)

    # --- single-step path (the literal module forward) ----------------------
    run_step = jax.jit(lambda c, x, h, p: rnn_forward(c, x, h, p,
                                                      hidden_size, output_size))
    out1, hid1 = run_step(category_seq[0], input_seq[0], hidden0, packed)
    out1 = jax.block_until_ready(out1)
    out1_ref, hid1_ref = rnn_forward_ref(category_seq[0], input_seq[0], hidden0, params)
    assert jnp.allclose(out1, out1_ref, atol=1e-4, rtol=1e-5)
    assert jnp.allclose(hid1, hid1_ref, atol=1e-4, rtol=1e-5)

    # --- bf16 compute path (MXU-native on v5e/v6e/v7x); state/accum stay f32 -
    packed_bf16 = prepare_params(params, n_categories, input_size, hidden_size,
                                 output_size, compute_dtype=jnp.bfloat16)
    outs_bf, hid_bf = run_seq(category_seq, input_seq, hidden0, packed_bf16)
    outs_bf = jax.block_until_ready(outs_bf)
    assert float(jnp.max(jnp.abs(outs_bf - outs_ref))) < 0.1
    assert float(jnp.max(jnp.abs(hid_bf - h_ref))) < 0.1

    print("KERNEL_OK")
</pallas_src>

<mosaic_0001>
module attributes {stable_mosaic.version = 11 : i64} {
  func.func @rnn_chunk_kernel(%arg0: i32, %arg1: memref<8x8x128xf32, #tpu.memory_space<vmem>>, %arg2: memref<8x128xf32, #tpu.memory_space<vmem>>, %arg3: memref<128x128xf32, #tpu.memory_space<vmem>>, %arg4: memref<128x128xf32, #tpu.memory_space<vmem>>, %arg5: memref<128x128xf32, #tpu.memory_space<vmem>>, %arg6: memref<8x8x128xf32, #tpu.memory_space<vmem>>, %arg7: memref<8x128xf32, #tpu.memory_space<vmem>>, %arg8: memref<64x128xf32, #tpu.memory_space<vmem>>) attributes {dimension_semantics = [#tpu.dimension_semantics<arbitrary>], iteration_bounds = array<i64: 1>, scalar_prefetch = 0 : i64, scratch_operands = 1 : i64, tpu.core_type = #tpu.core_type<tc>, window_params = [{transform_indices = @transform_0, window_bounds = array<i64: 8, 8, 128>}, {pipeline_mode = #tpu.pipeline_mode<synchronous>, transform_indices = @transform_1, window_bounds = array<i64: 8, 128>}, {pipeline_mode = #tpu.pipeline_mode<synchronous>, transform_indices = @transform_2, window_bounds = array<i64: 128, 128>}, {pipeline_mode = #tpu.pipeline_mode<synchronous>, transform_indices = @transform_3, window_bounds = array<i64: 128, 128>}, {pipeline_mode = #tpu.pipeline_mode<synchronous>, transform_indices = @transform_4, window_bounds = array<i64: 128, 128>}, {transform_indices = @transform_5, window_bounds = array<i64: 8, 8, 128>}, {pipeline_mode = #tpu.pipeline_mode<synchronous>, transform_indices = @transform_6, window_bounds = array<i64: 8, 128>}]} {
    %c0_i32 = arith.constant 0 : i32
    %0 = arith.cmpi eq, %arg0, %c0_i32 : i32
    %1 = arith.extui %0 : i1 to i32
    %c0_i32_0 = arith.constant 0 : i32
    %2 = arith.cmpi ne, %1, %c0_i32_0 : i32
    scf.if %2 {
      %c0_63 = arith.constant 0 : index
      %c0_64 = arith.constant 0 : index
      %105 = vector.load %arg2[%c0_63, %c0_64] : memref<8x128xf32, #tpu.memory_space<vmem>>, vector<8x128xf32>
      %c0_65 = arith.constant 0 : index
      %c0_66 = arith.constant 0 : index
      %106 = vector.load %arg7[%c0_65, %c0_66] : memref<8x128xf32, #tpu.memory_space<vmem>>, vector<8x128xf32>
      tpu.vector_store %arg7[%c0_65, %c0_66], %105 {strides = array<i32>} : memref<8x128xf32, #tpu.memory_space<vmem>>, vector<8x128xf32>,
    } else {
    }
    %c0 = arith.constant 0 : index
    %c0_1 = arith.constant 0 : index
    %c0_2 = arith.constant 0 : index
    %3 = vector.load %arg1[%c0, %c0_1, %c0_2] : memref<8x8x128xf32, #tpu.memory_space<vmem>>, vector<8x8x128xf32>
    %4 = vector.shape_cast %3 : vector<8x8x128xf32> to vector<64x128xf32>
    %c0_3 = arith.constant 0 : index
    %c0_4 = arith.constant 0 : index
    %5 = vector.load %arg3[%c0_3, %c0_4] : memref<128x128xf32, #tpu.memory_space<vmem>>, vector<128x128xf32>
    %cst = arith.constant dense<0.000000e+00> : vector<64x128xf32>
    %6 = tpu.matmul %4, %5, %cst {dimension_numbers = #tpu.dot_dimension_numbers<[1], [0], [0], [1], [0, 0, 1, 1], [], []>} : vector<64x128xf32>, vector<128x128xf32>, vector<64x128xf32> -> vector<64x128xf32>
    %c0_5 = arith.constant 0 : index
    %c0_6 = arith.constant 0 : index
    %7 = vector.load %arg8[%c0_5, %c0_6] : memref<64x128xf32, #tpu.memory_space<vmem>>, vector<64x128xf32>
    tpu.vector_store %arg8[%c0_5, %c0_6], %6 {strides = array<i32>} : memref<64x128xf32, #tpu.memory_space<vmem>>, vector<64x128xf32>,
    %c0_7 = arith.constant 0 : index
    %c0_8 = arith.constant 0 : index
    %8 = vector.load %arg4[%c0_7, %c0_8] : memref<128x128xf32, #tpu.memory_space<vmem>>, vector<128x128xf32>
    %c8_i32 = arith.constant 8 : i32
    %9 = arith.muli %arg0, %c8_i32 : i32
    %c0_9 = arith.constant 0 : index
    %c0_10 = arith.constant 0 : index
    %10 = vector.load %arg7[%c0_9, %c0_10] : memref<8x128xf32, #tpu.memory_space<vmem>>, vector<8x128xf32>
    %c0_i32_11 = arith.constant 0 : i32
    %c8_i32_12 = arith.constant 8 : i32
    %11 = arith.muli %c0_i32_11, %c8_i32_12 : i32
    %12 = tpu.assume_multiple %11, 8 : i32
    %13 = arith.index_cast %12 : i32 to index
    %c0_13 = arith.constant 0 : index
    %14 = vector.load %arg8[%13, %c0_13] : memref<64x128xf32, #tpu.memory_space<vmem>>, vector<8x128xf32>
    %cst_14 = arith.constant dense<0.000000e+00> : vector<8x128xf32>
    %15 = tpu.matmul %10, %8, %cst_14 {dimension_numbers = #tpu.dot_dimension_numbers<[1], [0], [0], [1], [0, 0, 1, 1], [], []>} : vector<8x128xf32>, vector<128x128xf32>, vector<8x128xf32> -> vector<8x128xf32>
    %16 = arith.addf %14, %15 : vector<8x128xf32>
    %17 = arith.index_cast %12 : i32 to index
    %c0_15 = arith.constant 0 : index
    %18 = vector.load %arg8[%17, %c0_15] : memref<64x128xf32, #tpu.memory_space<vmem>>, vector<8x128xf32>
    tpu.vector_store %arg8[%17, %c0_15], %16 {strides = array<i32>} : memref<64x128xf32, #tpu.memory_space<vmem>>, vector<8x128xf32>,
    %19 = arith.addi %9, %c0_i32_11 : i32
    %c8_i32_16 = arith.constant 8 : i32
    %20 = arith.cmpi slt, %19, %c8_i32_16 : i32
    %21 = arith.select %20, %16, %10 : vector<8x128xf32>
    %c1_i32 = arith.constant 1 : i32
    %c8_i32_17 = arith.constant 8 : i32
    %22 = arith.muli %c1_i32, %c8_i32_17 : i32
    %23 = tpu.assume_multiple %22, 8 : i32
    %24 = arith.index_cast %23 : i32 to index
    %c0_18 = arith.constant 0 : index
    %25 = vector.load %arg8[%24, %c0_18] : memref<64x128xf32, #tpu.memory_space<vmem>>, vector<8x128xf32>
    %cst_19 = arith.constant dense<0.000000e+00> : vector<8x128xf32>
    %26 = tpu.matmul %21, %8, %cst_19 {dimension_numbers = #tpu.dot_dimension_numbers<[1], [0], [0], [1], [0, 0, 1, 1], [], []>} : vector<8x128xf32>, vector<128x128xf32>, vector<8x128xf32> -> vector<8x128xf32>
    %27 = arith.addf %25, %26 : vector<8x128xf32>
    %28 = arith.index_cast %23 : i32 to index
    %c0_20 = arith.constant 0 : index
    %29 = vector.load %arg8[%28, %c0_20] : memref<64x128xf32, #tpu.memory_space<vmem>>, vector<8x128xf32>
    tpu.vector_store %arg8[%28, %c0_20], %27 {strides = array<i32>} : memref<64x128xf32, #tpu.memory_space<vmem>>, vector<8x128xf32>,
    %30 = arith.addi %9, %c1_i32 : i32
    %c8_i32_21 = arith.constant 8 : i32
    %31 = arith.cmpi slt, %30, %c8_i32_21 : i32
    %32 = arith.select %31, %27, %21 : vector<8x128xf32>
    %c2_i32 = arith.constant 2 : i32
    %c8_i32_22 = arith.constant 8 : i32
    %33 = arith.muli %c2_i32, %c8_i32_22 : i32
    %34 = tpu.assume_multiple %33, 8 : i32
    %35 = arith.index_cast %34 : i32 to index
    %c0_23 = arith.constant 0 : index
    %36 = vector.load %arg8[%35, %c0_23] : memref<64x128xf32, #tpu.memory_space<vmem>>, vector<8x128xf32>
    %cst_24 = arith.constant dense<0.000000e+00> : vector<8x128xf32>
    %37 = tpu.matmul %32, %8, %cst_24 {dimension_numbers = #tpu.dot_dimension_numbers<[1], [0], [0], [1], [0, 0, 1, 1], [], []>} : vector<8x128xf32>, vector<128x128xf32>, vector<8x128xf32> -> vector<8x128xf32>
    %38 = arith.addf %36, %37 : vector<8x128xf32>
    %39 = arith.index_cast %34 : i32 to index
    %c0_25 = arith.constant 0 : index
    %40 = vector.load %arg8[%39, %c0_25] : memref<64x128xf32, #tpu.memory_space<vmem>>, vector<8x128xf32>
    tpu.vector_store %arg8[%39, %c0_25], %38 {strides = array<i32>} : memref<64x128xf32, #tpu.memory_space<vmem>>, vector<8x128xf32>,
    %41 = arith.addi %9, %c2_i32 : i32
    %c8_i32_26 = arith.constant 8 : i32
    %42 = arith.cmpi slt, %41, %c8_i32_26 : i32
    %43 = arith.select %42, %38, %32 : vector<8x128xf32>
    %c3_i32 = arith.constant 3 : i32
    %c8_i32_27 = arith.constant 8 : i32
    %44 = arith.muli %c3_i32, %c8_i32_27 : i32
    %45 = tpu.assume_multiple %44, 8 : i32
    %46 = arith.index_cast %45 : i32 to index
    %c0_28 = arith.constant 0 : index
    %47 = vector.load %arg8[%46, %c0_28] : memref<64x128xf32, #tpu.memory_space<vmem>>, vector<8x128xf32>
    %cst_29 = arith.constant dense<0.000000e+00> : vector<8x128xf32>
    %48 = tpu.matmul %43, %8, %cst_29 {dimension_numbers = #tpu.dot_dimension_numbers<[1], [0], [0], [1], [0, 0, 1, 1], [], []>} : vector<8x128xf32>, vector<128x128xf32>, vector<8x128xf32> -> vector<8x128xf32>
    %49 = arith.addf %47, %48 : vector<8x128xf32>
    %50 = arith.index_cast %45 : i32 to index
    %c0_30 = arith.constant 0 : index
    %51 = vector.load %arg8[%50, %c0_30] : memref<64x128xf32, #tpu.memory_space<vmem>>, vector<8x128xf32>
    tpu.vector_store %arg8[%50, %c0_30], %49 {strides = array<i32>} : memref<64x128xf32, #tpu.memory_space<vmem>>, vector<8x128xf32>,
    %52 = arith.addi %9, %c3_i32 : i32
    %c8_i32_31 = arith.constant 8 : i32
    %53 = arith.cmpi slt, %52, %c8_i32_31 : i32
    %54 = arith.select %53, %49, %43 : vector<8x128xf32>
    %c4_i32 = arith.constant 4 : i32
    %c8_i32_32 = arith.constant 8 : i32
    %55 = arith.muli %c4_i32, %c8_i32_32 : i32
    %56 = tpu.assume_multiple %55, 8 : i32
    %57 = arith.index_cast %56 : i32 to index
    %c0_33 = arith.constant 0 : index
    %58 = vector.load %arg8[%57, %c0_33] : memref<64x128xf32, #tpu.memory_space<vmem>>, vector<8x128xf32>
    %cst_34 = arith.constant dense<0.000000e+00> : vector<8x128xf32>
    %59 = tpu.matmul %54, %8, %cst_34 {dimension_numbers = #tpu.dot_dimension_numbers<[1], [0], [0], [1], [0, 0, 1, 1], [], []>} : vector<8x128xf32>, vector<128x128xf32>, vector<8x128xf32> -> vector<8x128xf32>
    %60 = arith.addf %58, %59 : vector<8x128xf32>
    %61 = arith.index_cast %56 : i32 to index
    %c0_35 = arith.constant 0 : index
    %62 = vector.load %arg8[%61, %c0_35] : memref<64x128xf32, #tpu.memory_space<vmem>>, vector<8x128xf32>
    tpu.vector_store %arg8[%61, %c0_35], %60 {strides = array<i32>} : memref<64x128xf32, #tpu.memory_space<vmem>>, vector<8x128xf32>,
    %63 = arith.addi %9, %c4_i32 : i32
    %c8_i32_36 = arith.constant 8 : i32
    %64 = arith.cmpi slt, %63, %c8_i32_36 : i32
    %65 = arith.select %64, %60, %54 : vector<8x128xf32>
    %c5_i32 = arith.constant 5 : i32
    %c8_i32_37 = arith.constant 8 : i32
    %66 = arith.muli %c5_i32, %c8_i32_37 : i32
    %67 = tpu.assume_multiple %66, 8 : i32
    %68 = arith.index_cast %67 : i32 to index
    %c0_38 = arith.constant 0 : index
    %69 = vector.load %arg8[%68, %c0_38] : memref<64x128xf32, #tpu.memory_space<vmem>>, vector<8x128xf32>
    %cst_39 = arith.constant dense<0.000000e+00> : vector<8x128xf32>
    %70 = tpu.matmul %65, %8, %cst_39 {dimension_numbers = #tpu.dot_dimension_numbers<[1], [0], [0], [1], [0, 0, 1, 1], [], []>} : vector<8x128xf32>, vector<128x128xf32>, vector<8x128xf32> -> vector<8x128xf32>
    %71 = arith.addf %69, %70 : vector<8x128xf32>
    %72 = arith.index_cast %67 : i32 to index
    %c0_40 = arith.constant 0 : index
    %73 = vector.load %arg8[%72, %c0_40] : memref<64x128xf32, #tpu.memory_space<vmem>>, vector<8x128xf32>
    tpu.vector_store %arg8[%72, %c0_40], %71 {strides = array<i32>} : memref<64x128xf32, #tpu.memory_space<vmem>>, vector<8x128xf32>,
    %74 = arith.addi %9, %c5_i32 : i32
    %c8_i32_41 = arith.constant 8 : i32
    %75 = arith.cmpi slt, %74, %c8_i32_41 : i32
    %76 = arith.select %75, %71, %65 : vector<8x128xf32>
    %c6_i32 = arith.constant 6 : i32
    %c8_i32_42 = arith.constant 8 : i32
    %77 = arith.muli %c6_i32, %c8_i32_42 : i32
    %78 = tpu.assume_multiple %77, 8 : i32
    %79 = arith.index_cast %78 : i32 to index
    %c0_43 = arith.constant 0 : index
    %80 = vector.load %arg8[%79, %c0_43] : memref<64x128xf32, #tpu.memory_space<vmem>>, vector<8x128xf32>
    %cst_44 = arith.constant dense<0.000000e+00> : vector<8x128xf32>
    %81 = tpu.matmul %76, %8, %cst_44 {dimension_numbers = #tpu.dot_dimension_numbers<[1], [0], [0], [1], [0, 0, 1, 1], [], []>} : vector<8x128xf32>, vector<128x128xf32>, vector<8x128xf32> -> vector<8x128xf32>
    %82 = arith.addf %80, %81 : vector<8x128xf32>
    %83 = arith.index_cast %78 : i32 to index
    %c0_45 = arith.constant 0 : index
    %84 = vector.load %arg8[%83, %c0_45] : memref<64x128xf32, #tpu.memory_space<vmem>>, vector<8x128xf32>
    tpu.vector_store %arg8[%83, %c0_45], %82 {strides = array<i32>} : memref<64x128xf32, #tpu.memory_space<vmem>>, vector<8x128xf32>,
    %85 = arith.addi %9, %c6_i32 : i32
    %c8_i32_46 = arith.constant 8 : i32
    %86 = arith.cmpi slt, %85, %c8_i32_46 : i32
    %87 = arith.select %86, %82, %76 : vector<8x128xf32>
    %c7_i32 = arith.constant 7 : i32
    %c8_i32_47 = arith.constant 8 : i32
    %88 = arith.muli %c7_i32, %c8_i32_47 : i32
    %89 = tpu.assume_multiple %88, 8 : i32
    %90 = arith.index_cast %89 : i32 to index
    %c0_48 = arith.constant 0 : index
    %91 = vector.load %arg8[%90, %c0_48] : memref<64x128xf32, #tpu.memory_space<vmem>>, vector<8x128xf32>
    %cst_49 = arith.constant dense<0.000000e+00> : vector<8x128xf32>
    %92 = tpu.matmul %87, %8, %cst_49 {dimension_numbers = #tpu.dot_dimension_numbers<[1], [0], [0], [1], [0, 0, 1, 1], [], []>} : vector<8x128xf32>, vector<128x128xf32>, vector<8x128xf32> -> vector<8x128xf32>
    %93 = arith.addf %91, %92 : vector<8x128xf32>
    %94 = arith.index_cast %89 : i32 to index
    %c0_50 = arith.constant 0 : index
    %95 = vector.load %arg8[%94, %c0_50] : memref<64x128xf32, #tpu.memory_space<vmem>>, vector<8x128xf32>
    tpu.vector_store %arg8[%94, %c0_50], %93 {strides = array<i32>} : memref<64x128xf32, #tpu.memory_space<vmem>>, vector<8x128xf32>,
    %96 = arith.addi %9, %c7_i32 : i32
    %c8_i32_51 = arith.constant 8 : i32
    %97 = arith.cmpi slt, %96, %c8_i32_51 : i32
    %98 = arith.select %97, %93, %87 : vector<8x128xf32>
    %c8_i32_52 = arith.constant 8 : i32
    %c0_53 = arith.constant 0 : index
    %c0_54 = arith.constant 0 : index
    %99 = vector.load %arg7[%c0_53, %c0_54] : memref<8x128xf32, #tpu.memory_space<vmem>>, vector<8x128xf32>
    tpu.vector_store %arg7[%c0_53, %c0_54], %98 {strides = array<i32>} : memref<8x128xf32, #tpu.memory_space<vmem>>, vector<8x128xf32>,
    %c0_55 = arith.constant 0 : index
    %c0_56 = arith.constant 0 : index
    %100 = vector.load %arg8[%c0_55, %c0_56] : memref<64x128xf32, #tpu.memory_space<vmem>>, vector<64x128xf32>
    %c0_57 = arith.constant 0 : index
    %c0_58 = arith.constant 0 : index
    %101 = vector.load %arg5[%c0_57, %c0_58] : memref<128x128xf32, #tpu.memory_space<vmem>>, vector<128x128xf32>
    %cst_59 = arith.constant dense<0.000000e+00> : vector<64x128xf32>
    %102 = tpu.matmul %100, %101, %cst_59 {dimension_numbers = #tpu.dot_dimension_numbers<[1], [0], [0], [1], [0, 0, 1, 1], [], []>} : vector<64x128xf32>, vector<128x128xf32>, vector<64x128xf32> -> vector<64x128xf32>
    %103 = vector.shape_cast %102 : vector<64x128xf32> to vector<8x8x128xf32>
    %c0_60 = arith.constant 0 : index
    %c0_61 = arith.constant 0 : index
    %c0_62 = arith.constant 0 : index
    %104 = vector.load %arg6[%c0_60, %c0_61, %c0_62] : memref<8x8x128xf32, #tpu.memory_space<vmem>>, vector<8x8x128xf32>
    tpu.vector_store %arg6[%c0_60, %c0_61, %c0_62], %103 {strides = array<i32>} : memref<8x8x128xf32, #tpu.memory_space<vmem>>, vector<8x8x128xf32>,
    return
  }
  func.func @transform_0(%arg0: i32) -> (i32, i32, i32) {
    %c0_i32 = arith.constant 0 : i32
    %c0_i32_0 = arith.constant 0 : i32
    %c0_i32_1 = arith.constant 0 : i32
    return %arg0, %c0_i32, %c0_i32_0 : i32, i32, i32
  }
  func.func @transform_1(%arg0: i32) -> (i32, i32) {
    %c0_i32 = arith.constant 0 : i32
    %c0_i32_0 = arith.constant 0 : i32
    %c0_i32_1 = arith.constant 0 : i32
    return %c0_i32, %c0_i32_0 : i32, i32
  }
  func.func @transform_2(%arg0: i32) -> (i32, i32) {
    %c0_i32 = arith.constant 0 : i32
    %c0_i32_0 = arith.constant 0 : i32
    %c0_i32_1 = arith.constant 0 : i32
    return %c0_i32, %c0_i32_0 : i32, i32
  }
  func.func @transform_3(%arg0: i32) -> (i32, i32) {
    %c0_i32 = arith.constant 0 : i32
    %c0_i32_0 = arith.constant 0 : i32
    %c0_i32_1 = arith.constant 0 : i32
    return %c0_i32, %c0_i32_0 : i32, i32
  }
  func.func @transform_4(%arg0: i32) -> (i32, i32) {
    %c0_i32 = arith.constant 0 : i32
    %c0_i32_0 = arith.constant 0 : i32
    %c0_i32_1 = arith.constant 0 : i32
    return %c0_i32, %c0_i32_0 : i32, i32
  }
  func.func @transform_5(%arg0: i32) -> (i32, i32, i32) {
    %c0_i32 = arith.constant 0 : i32
    %c0_i32_0 = arith.constant 0 : i32
    %c0_i32_1 = arith.constant 0 : i32
    return %arg0, %c0_i32, %c0_i32_0 : i32, i32, i32
  }
  func.func @transform_6(%arg0: i32) -> (i32, i32) {
    %c0_i32 = arith.constant 0 : i32
    %c0_i32_0 = arith.constant 0 : i32
    %c0_i32_1 = arith.constant 0 : i32
    return %c0_i32, %c0_i32_0 : i32, i32
  }
}

</mosaic_0001>

<llo_original>
// kernel: _lambda_.1
$region0: #{_lambda_.1}
  #allocation0 [shape = 'u32[]', space=smem, size = 0x4, offset = 0x4, fixed_abs, tag = 'smem constant byte address 0x4 - core index']
  #allocation1 [shape = 'u32[72,128]{1,0:T(1,128)}', space=vmem, size = 0x9000, scoped, tag = 'internal scratch']
  #allocation2 [shape = 'f32[64,128]{1,0:T(8,128)}', space=vmem, size = 0x8000, scoped, tag = 'scratch operand']
  %s0 = inlined_call_operand.vmem [shape: f32[8,8,128], index: 0, kind: input, shape index: {}]
  %s1 = inlined_call_operand.vmem [shape: f32[8,128], index: 1, kind: input, shape index: {}, may-alias: {1,6}]
  %s2 = inlined_call_operand.hbm [shape: f32[128,128], index: 2, kind: input, shape index: {}]
  %s3 = inlined_call_operand.hbm [shape: f32[128,128], index: 3, kind: input, shape index: {}]
  %s4 = inlined_call_operand.hbm [shape: f32[128,128], index: 4, kind: input, shape index: {}]
  %s5 = inlined_call_operand.vmem [shape: f32[8,8,128], index: 5, kind: output, shape index: {0}]
  %s6 = inlined_call_operand.vmem [shape: f32[8,128], index: 6, kind: output, shape index: {1}, may-alias: {1,6}]
  %7 = xla_tuple %s5, %s6
  %s8 = sld [smem:[#allocation0]]
  $region54: #{_lambda_.1} parent=0
    _
  %s10 = ssub.s32 1, %s8
  %s11 = scalar_select 0, %s10, %s8
  $region1: #{_lambda_.1} parent=0
    #allocation3 [shape = 'u8[65536]{0}', space=vmem, size = 0x10000, scoped, tag = 'input window, operand 2, single buffered']
    #allocation4 [shape = 's32[1]{0}', space=sflag, size = 0x4, scoped, tag = 'scoped memory for _lambda_.1']
    #allocation5 [shape = 'u8[65536]{0}', space=vmem, size = 0x10000, scoped, tag = 'input window, operand 3, single buffered']
    #allocation6 [shape = 's32[1]{0}', space=sflag, size = 0x4, scoped, tag = 'scoped memory for _lambda_.1']
    #allocation7 [shape = 'u8[65536]{0}', space=vmem, size = 0x10000, scoped, tag = 'input window, operand 4, single buffered']
    %12 = vsyncpa [#allocation4], 0
    %13 = vsyncpa [#allocation6], 0
    // Predicated region
    $region2: #{_lambda_.1} parent=1 // pred_check
      _
    $region3: #{_lambda_.1} parent=1 // pred_check_branch
      %15 = sbr.rel (0) target = $region5
    $region4: #{_lambda_.1} parent=1 // pred_region
      _
    $region5: #{_lambda_.1} parent=1 // pred_fallthru
      _
    // Predicated region
    $region6: #{_lambda_.1} parent=1 // pred_check
      _
    $region7: #{_lambda_.1} parent=1 // pred_check_branch
      %17 = sbr.rel (0) target = $region9
    $region8: #{_lambda_.1} parent=1 // pred_region
      _
    $region9: #{_lambda_.1} parent=1 // pred_fallthru
      _
    // Predicated region
    $region10: #{_lambda_.1} parent=1 // pred_check
      _
    $region11: #{_lambda_.1} parent=1 // pred_check_branch
      %19 = sbr.rel (0) target = $region13
    $region12: #{_lambda_.1} parent=1 // pred_region
      %21 = vsyncadd [#allocation4], 0
      %s22 = sshll.u32 %s2, 4
      %s23 = int_to_ptr.hbm [resolvable:$true] %s22
      %s24 = sshll.u32 [#allocation3], 4
      %s25 = int_to_ptr.vmem [resolvable:$true] %s24
      %30 = dma.hbm_to_vmem [thread:$0]  %s23, 2048, %s25, [#allocation4], 128, 128, 8
    $region13: #{_lambda_.1} parent=1 // pred_fallthru
      _
    // Predicated region
    $region14: #{_lambda_.1} parent=1 // pred_check
      _
    $region15: #{_lambda_.1} parent=1 // pred_check_branch
      %32 = sbr.rel (0) target = $region17
    $region16: #{_lambda_.1} parent=1 // pred_region
      %34 = vsyncadd [#allocation6], 0
      %s35 = sshll.u32 %s3, 4
      %s36 = int_to_ptr.hbm [resolvable:$true] %s35
      %s37 = sshll.u32 [#allocation5], 4
      %s38 = int_to_ptr.vmem [resolvable:$true] %s37
      %43 = dma.hbm_to_vmem [thread:$0]  %s36, 2048, %s38, [#allocation6], 128, 128, 8
    $region17: #{_lambda_.1} parent=1 // pred_fallthru
      _
    // Predicated region
    $region18: #{_lambda_.1} parent=1 // pred_check
      _
    $region19: #{_lambda_.1} parent=1 // pred_check_branch
      %45 = sbr.rel (0) target = $region21
    $region20: #{_lambda_.1} parent=1 // pred_region
      %47 = vsyncadd [#allocation6], 0
      %s48 = sshll.u32 %s4, 4
      %s49 = int_to_ptr.hbm [resolvable:$true] %s48
      %s50 = sshll.u32 [#allocation7], 4
      %s51 = int_to_ptr.vmem [resolvable:$true] %s50
      %56 = dma.hbm_to_vmem [thread:$0]  %s49, 2048, %s51, [#allocation6], 128, 128, 8
    $region21: #{_lambda_.1} parent=1 // pred_fallthru
      _
    // Predicated region
    $region22: #{_lambda_.1} parent=1 // pred_check
      _
    $region23: #{_lambda_.1} parent=1 // pred_check_branch
      %58 = sbr.rel (0) target = $region25
    $region24: #{_lambda_.1} parent=1 // pred_region
      %60 = dma.done [#allocation4], 2048
    $region25: #{_lambda_.1} parent=1 // pred_fallthru
      _
    // Predicated region
    $region26: #{_lambda_.1} parent=1 // pred_check
      _
    $region27: #{_lambda_.1} parent=1 // pred_check_branch
      %62 = sbr.rel (0) target = $region29
    $region28: #{_lambda_.1} parent=1 // pred_region
      %64 = dma.done [#allocation6], 2048
    $region29: #{_lambda_.1} parent=1 // pred_fallthru
      _
    // Predicated region
    $region30: #{_lambda_.1} parent=1 // pred_check
      _
    $region31: #{_lambda_.1} parent=1 // pred_check_branch
      %66 = sbr.rel (0) target = $region33
    $region32: #{_lambda_.1} parent=1 // pred_region
      %68 = dma.done [#allocation6], 2048
    $region33: #{_lambda_.1} parent=1 // pred_fallthru
      _
    %p69 = scmp.eq.s32.totalorder 0, 0
    // Predicated region
    $region34: #{_lambda_.1} parent=1 // pred_check
      %p70 = pneg %p69
    $region35: #{_lambda_.1} parent=1 // pred_check_branch
      %72 = sbr.rel (%p70) target = $region37
    $region36: #{_lambda_.1} parent=1 // pred_region
      %v73 = vld [vmem:[%s1] sm:$0xff]
      %74 = vst [vmem:[%s6] sm:$0xff] %v73
    $region37: #{_lambda_.1} parent=1 // pred_fallthru
      _
    %v75 = vld [vmem:[%s0] sm:$0xff]
    %v76 = vld [vmem:[%s0 + $0x8] sm:$0xff]
    %v77 = vld [vmem:[%s0 + $0x10] sm:$0xff]
    %v78 = vld [vmem:[%s0 + $0x18] sm:$0xff]
    %v79 = vld [vmem:[%s0 + $0x20] sm:$0xff]
    %v80 = vld [vmem:[%s0 + $0x28] sm:$0xff]
    %v81 = vld [vmem:[%s0 + $0x30] sm:$0xff]
    %v82 = vld [vmem:[%s0 + $0x38] sm:$0xff]
    %v83 = vld [vmem:[#allocation3] sm:$0xff]
    %v84 = vld [vmem:[#allocation3 + $0x8] sm:$0xff]
    %v85 = vld [vmem:[#allocation3 + $0x10] sm:$0xff]
    %v86 = vld [vmem:[#allocation3 + $0x18] sm:$0xff]
    %v87 = vld [vmem:[#allocation3 + $0x20] sm:$0xff]
    %v88 = vld [vmem:[#allocation3 + $0x28] sm:$0xff]
    %v89 = vld [vmem:[#allocation3 + $0x30] sm:$0xff]
    %v90 = vld [vmem:[#allocation3 + $0x38] sm:$0xff]
    %v91 = vld [vmem:[#allocation3 + $0x40] sm:$0xff]
    %v92 = vld [vmem:[#allocation3 + $0x48] sm:$0xff]
    %v93 = vld [vmem:[#allocation3 + $0x50] sm:$0xff]
    %v94 = vld [vmem:[#allocation3 + $0x58] sm:$0xff]
    %v95 = vld [vmem:[#allocation3 + $0x60] sm:$0xff]
    %v96 = vld [vmem:[#allocation3 + $0x68] sm:$0xff]
    %v97 = vld [vmem:[#allocation3 + $0x70] sm:$0xff]
    %v98 = vld [vmem:[#allocation3 + $0x78] sm:$0xff]
    %99 = vmatpush.msra.mxu0 %v98
    %100 = vmatpush.msra.mxu0 %v97
    %101 = vmatpush.msra.mxu0 %v96
    %102 = vmatpush.msra.mxu0 %v95
    %103 = vmatpush.msra.mxu0 %v94
    %104 = vmatpush.msra.mxu0 %v93
    %105 = vmatpush.msra.mxu0 %v92
    %106 = vmatpush.msra.mxu0 %v91
    %107 = vmatpush.msra.mxu0 %v90
    %108 = vmatpush.msra.mxu0 %v89
    %109 = vmatpush.msra.mxu0 %v88
    %110 = vmatpush.msra.mxu0 %v87
    %111 = vmatpush.msra.mxu0 %v86
    %112 = vmatpush.msra.mxu0 %v85
    %113 = vmatpush.msra.mxu0 %v84
    %114 = vmatpush.msra.mxu0 %v83
    %115 = vmatmul.f32.gmra.mxu0 %v75
    %v116 = vpop.f32.mrf.mxu0
    %v117 = vadd.f32 0.0, %v116
    %118 = vmatmul.f32.gmra.mxu0 %v76
    %v119 = vpop.f32.mrf.mxu0
    %v120 = vadd.f32 0.0, %v119
    %121 = vmatmul.f32.gmra.mxu0 %v77
    %v122 = vpop.f32.mrf.mxu0
    %v123 = vadd.f32 0.0, %v122
    %124 = vmatmul.f32.gmra.mxu0 %v78
    %v125 = vpop.f32.mrf.mxu0
    %v126 = vadd.f32 0.0, %v125
    %127 = vmatmul.f32.gmra.mxu0 %v79
    %v128 = vpop.f32.mrf.mxu0
    %v129 = vadd.f32 0.0, %v128
    %130 = vmatmul.f32.gmra.mxu0 %v80
    %v131 = vpop.f32.mrf.mxu0
    %v132 = vadd.f32 0.0, %v131
    %133 = vmatmul.f32.gmra.mxu0 %v81
    %v134 = vpop.f32.mrf.mxu0
    %v135 = vadd.f32 0.0, %v134
    %136 = vmatmul.f32.gmra.mxu0 %v82
    %v137 = vpop.f32.mrf.mxu0
    %v138 = vadd.f32 0.0, %v137
    %139 = vdwg.mxu0
    %140 = vst [vmem:[#allocation2] sm:$0xff] %v117
    %141 = vst [vmem:[#allocation2 + $0x8] sm:$0xff] %v120
    %142 = vst [vmem:[#allocation2 + $0x10] sm:$0xff] %v123
    %143 = vst [vmem:[#allocation2 + $0x18] sm:$0xff] %v126
    %144 = vst [vmem:[#allocation2 + $0x20] sm:$0xff] %v129
    %145 = vst [vmem:[#allocation2 + $0x28] sm:$0xff] %v132
    %146 = vst [vmem:[#allocation2 + $0x30] sm:$0xff] %v135
    %147 = vst [vmem:[#allocation2 + $0x38] sm:$0xff] %v138
    %v148 = vld [vmem:[#allocation5] sm:$0xff]
    %v149 = vld [vmem:[#allocation5 + $0x8] sm:$0xff]
    %v150 = vld [vmem:[#allocation5 + $0x10] sm:$0xff]
    %v151 = vld [vmem:[#allocation5 + $0x18] sm:$0xff]
    %v152 = vld [vmem:[#allocation5 + $0x20] sm:$0xff]
    %v153 = vld [vmem:[#allocation5 + $0x28] sm:$0xff]
    %v154 = vld [vmem:[#allocation5 + $0x30] sm:$0xff]
    %v155 = vld [vmem:[#allocation5 + $0x38] sm:$0xff]
    %v156 = vld [vmem:[#allocation5 + $0x40] sm:$0xff]
    %v157 = vld [vmem:[#allocation5 + $0x48] sm:$0xff]
    %v158 = vld [vmem:[#allocation5 + $0x50] sm:$0xff]
    %v159 = vld [vmem:[#allocation5 + $0x58] sm:$0xff]
    %v160 = vld [vmem:[#allocation5 + $0x60] sm:$0xff]
    %v161 = vld [vmem:[#allocation5 + $0x68] sm:$0xff]
    %v162 = vld [vmem:[#allocation5 + $0x70] sm:$0xff]
    %v163 = vld [vmem:[#allocation5 + $0x78] sm:$0xff]
    %s164 = smul.u32 0, 8
    %v165 = vld [vmem:[%s6] sm:$0xff]
    %v166 = vld [vmem:[#allocation2] sm:$0xff]
    %167 = vmatpush.msra.mxu0 %v163
    %168 = vmatpush.msra.mxu0 %v162
    %169 = vmatpush.msra.mxu0 %v161
    %170 = vmatpush.msra.mxu0 %v160
    %171 = vmatpush.msra.mxu0 %v159
    %172 = vmatpush.msra.mxu0 %v158
    %173 = vmatpush.msra.mxu0 %v157
    %174 = vmatpush.msra.mxu0 %v156
    %175 = vmatpush.msra.mxu0 %v155
    %176 = vmatpush.msra.mxu0 %v154
    %177 = vmatpush.msra.mxu0 %v153
    %178 = vmatpush.msra.mxu0 %v152
    %179 = vmatpush.msra.mxu0 %v151
    %180 = vmatpush.msra.mxu0 %v150
    %181 = vmatpush.msra.mxu0 %v149
    %182 = vmatpush.msra.mxu0 %v148
    %183 = vmatmul.f32.gmra.mxu0 %v165
    %v184 = vpop.f32.mrf.mxu0
    %v185 = vadd.f32 0.0, %v184
    %186 = vdwg.mxu0
    %v187 = vadd.f32 %v166, %v185
    %188 = vst [vmem:[#allocation2] sm:$0xff] %v187
    %p189 = scmp.lt.s32.totalorder %s164, 8
    %s190 = scalar_select %p189, 1, 0
    %v191 = vstv %s190
    %vm192 = vcmp.eq.s32.totalorder %v191, 1
    %v193 = vsel %vm192, %v187, %v165
    %s194 = scalar_lea.vmem [#allocation2], 8
    %v195 = vld [vmem:[%s194] sm:$0xff]
    %196 = vmatpush.msra.mxu0 %v163
    %197 = vmatpush.msra.mxu0 %v162
    %198 = vmatpush.msra.mxu0 %v161
    %199 = vmatpush.msra.mxu0 %v160
    %200 = vmatpush.msra.mxu0 %v159
    %201 = vmatpush.msra.mxu0 %v158
    %202 = vmatpush.msra.mxu0 %v157
    %203 = vmatpush.msra.mxu0 %v156
    %204 = vmatpush.msra.mxu0 %v155
    %205 = vmatpush.msra.mxu0 %v154
    %206 = vmatpush.msra.mxu0 %v153
    %207 = vmatpush.msra.mxu0 %v152
    %208 = vmatpush.msra.mxu0 %v151
    %209 = vmatpush.msra.mxu0 %v150
    %210 = vmatpush.msra.mxu0 %v149
    %211 = vmatpush.msra.mxu0 %v148
    %212 = vmatmul.f32.gmra.mxu0 %v193
    %v213 = vpop.f32.mrf.mxu0
    %v214 = vadd.f32 0.0, %v213
    %215 = vdwg.mxu0
    %v216 = vadd.f32 %v195, %v214
    %217 = vst [vmem:[%s194] sm:$0xff] %v216
    %s218 = sadd.s32 %s164, 1
    %p219 = scmp.lt.s32.totalorder %s218, 8
    %s220 = scalar_select %p219, 1, 0
    %v221 = vstv %s220
    %vm222 = vcmp.eq.s32.totalorder %v221, 1
    %v223 = vsel %vm222, %v216, %v193
    %s224 = scalar_lea.vmem [#allocation2], 16
    %v225 = vld [vmem:[%s224] sm:$0xff]
    %226 = vmatpush.msra.mxu0 %v163
    %227 = vmatpush.msra.mxu0 %v162
    %228 = vmatpush.msra.mxu0 %v161
    %229 = vmatpush.msra.mxu0 %v160
    %230 = vmatpush.msra.mxu0 %v159
    %231 = vmatpush.msra.mxu0 %v158
    %232 = vmatpush.msra.mxu0 %v157
    %233 = vmatpush.msra.mxu0 %v156
    %234 = vmatpush.msra.mxu0 %v155
    %235 = vmatpush.msra.mxu0 %v154
    %236 = vmatpush.msra.mxu0 %v153
    %237 = vmatpush.msra.mxu0 %v152
    %238 = vmatpush.msra.mxu0 %v151
    %239 = vmatpush.msra.mxu0 %v150
    %240 = vmatpush.msra.mxu0 %v149
    %241 = vmatpush.msra.mxu0 %v148
    %242 = vmatmul.f32.gmra.mxu0 %v223
    %v243 = vpop.f32.mrf.mxu0
    %v244 = vadd.f32 0.0, %v243
    %245 = vdwg.mxu0
    %v246 = vadd.f32 %v225, %v244
    %247 = vst [vmem:[%s224] sm:$0xff] %v246
    %s248 = sadd.s32 %s164, 2
    %p249 = scmp.lt.s32.totalorder %s248, 8
    %s250 = scalar_select %p249, 1, 0
    %v251 = vstv %s250
    %vm252 = vcmp.eq.s32.totalorder %v251, 1
    %v253 = vsel %vm252, %v246, %v223
    %s254 = scalar_lea.vmem [#allocation2], 24
    %v255 = vld [vmem:[%s254] sm:$0xff]
    %256 = vmatpush.msra.mxu0 %v163
    %257 = vmatpush.msra.mxu0 %v162
    %258 = vmatpush.msra.mxu0 %v161
    %259 = vmatpush.msra.mxu0 %v160
    %260 = vmatpush.msra.mxu0 %v159
    %261 = vmatpush.msra.mxu0 %v158
    %262 = vmatpush.msra.mxu0 %v157
    %263 = vmatpush.msra.mxu0 %v156
    %264 = vmatpush.msra.mxu0 %v155
    %265 = vmatpush.msra.mxu0 %v154
    %266 = vmatpush.msra.mxu0 %v153
    %267 = vmatpush.msra.mxu0 %v152
    %268 = vmatpush.msra.mxu0 %v151
    %269 = vmatpush.msra.mxu0 %v150
    %270 = vmatpush.msra.mxu0 %v149
    %271 = vmatpush.msra.mxu0 %v148
    %272 = vmatmul.f32.gmra.mxu0 %v253
    %v273 = vpop.f32.mrf.mxu0
    %v274 = vadd.f32 0.0, %v273
    %275 = vdwg.mxu0
    %v276 = vadd.f32 %v255, %v274
    %277 = vst [vmem:[%s254] sm:$0xff] %v276
    %s278 = sadd.s32 %s164, 3
    %p279 = scmp.lt.s32.totalorder %s278, 8
    %s280 = scalar_select %p279, 1, 0
    %v281 = vstv %s280
    %vm282 = vcmp.eq.s32.totalorder %v281, 1
    %v283 = vsel %vm282, %v276, %v253
    %s284 = scalar_lea.vmem [#allocation2], 32
    %v285 = vld [vmem:[%s284] sm:$0xff]
    %286 = vmatpush.msra.mxu0 %v163
    %287 = vmatpush.msra.mxu0 %v162
    %288 = vmatpush.msra.mxu0 %v161
    %289 = vmatpush.msra.mxu0 %v160
    %290 = vmatpush.msra.mxu0 %v159
    %291 = vmatpush.msra.mxu0 %v158
    %292 = vmatpush.msra.mxu0 %v157
    %293 = vmatpush.msra.mxu0 %v156
    %294 = vmatpush.msra.mxu0 %v155
    %295 = vmatpush.msra.mxu0 %v154
    %296 = vmatpush.msra.mxu0 %v153
    %297 = vmatpush.msra.mxu0 %v152
    %298 = vmatpush.msra.mxu0 %v151
    %299 = vmatpush.msra.mxu0 %v150
    %300 = vmatpush.msra.mxu0 %v149
    %301 = vmatpush.msra.mxu0 %v148
    %302 = vmatmul.f32.gmra.mxu0 %v283
    %v303 = vpop.f32.mrf.mxu0
    %v304 = vadd.f32 0.0, %v303
    %305 = vdwg.mxu0
    %v306 = vadd.f32 %v285, %v304
    %307 = vst [vmem:[%s284] sm:$0xff] %v306
    %s308 = sadd.s32 %s164, 4
    %p309 = scmp.lt.s32.totalorder %s308, 8
    %s310 = scalar_select %p309, 1, 0
    %v311 = vstv %s310
    %vm312 = vcmp.eq.s32.totalorder %v311, 1
    %v313 = vsel %vm312, %v306, %v283
    %s314 = scalar_lea.vmem [#allocation2], 40
    %v315 = vld [vmem:[%s314] sm:$0xff]
    %316 = vmatpush.msra.mxu0 %v163
    %317 = vmatpush.msra.mxu0 %v162
    %318 = vmatpush.msra.mxu0 %v161
    %319 = vmatpush.msra.mxu0 %v160
    %320 = vmatpush.msra.mxu0 %v159
    %321 = vmatpush.msra.mxu0 %v158
    %322 = vmatpush.msra.mxu0 %v157
    %323 = vmatpush.msra.mxu0 %v156
    %324 = vmatpush.msra.mxu0 %v155
    %325 = vmatpush.msra.mxu0 %v154
    %326 = vmatpush.msra.mxu0 %v153
    %327 = vmatpush.msra.mxu0 %v152
    %328 = vmatpush.msra.mxu0 %v151
    %329 = vmatpush.msra.mxu0 %v150
    %330 = vmatpush.msra.mxu0 %v149
    %331 = vmatpush.msra.mxu0 %v148
    %332 = vmatmul.f32.gmra.mxu0 %v313
    %v333 = vpop.f32.mrf.mxu0
    %v334 = vadd.f32 0.0, %v333
    %335 = vdwg.mxu0
    %v336 = vadd.f32 %v315, %v334
    %337 = vst [vmem:[%s314] sm:$0xff] %v336
    %s338 = sadd.s32 %s164, 5
    %p339 = scmp.lt.s32.totalorder %s338, 8
    %s340 = scalar_select %p339, 1, 0
    %v341 = vstv %s340
    %vm342 = vcmp.eq.s32.totalorder %v341, 1
    %v343 = vsel %vm342, %v336, %v313
    %s344 = scalar_lea.vmem [#allocation2], 48
    %v345 = vld [vmem:[%s344] sm:$0xff]
    %346 = vmatpush.msra.mxu0 %v163
    %347 = vmatpush.msra.mxu0 %v162
    %348 = vmatpush.msra.mxu0 %v161
    %349 = vmatpush.msra.mxu0 %v160
    %350 = vmatpush.msra.mxu0 %v159
    %351 = vmatpush.msra.mxu0 %v158
    %352 = vmatpush.msra.mxu0 %v157
    %353 = vmatpush.msra.mxu0 %v156
    %354 = vmatpush.msra.mxu0 %v155
    %355 = vmatpush.msra.mxu0 %v154
    %356 = vmatpush.msra.mxu0 %v153
    %357 = vmatpush.msra.mxu0 %v152
    %358 = vmatpush.msra.mxu0 %v151
    %359 = vmatpush.msra.mxu0 %v150
    %360 = vmatpush.msra.mxu0 %v149
    %361 = vmatpush.msra.mxu0 %v148
    %362 = vmatmul.f32.gmra.mxu0 %v343
    %v363 = vpop.f32.mrf.mxu0
    %v364 = vadd.f32 0.0, %v363
    %365 = vdwg.mxu0
    %v366 = vadd.f32 %v345, %v364
    %367 = vst [vmem:[%s344] sm:$0xff] %v366
    %s368 = sadd.s32 %s164, 6
    %p369 = scmp.lt.s32.totalorder %s368, 8
    %s370 = scalar_select %p369, 1, 0
    %v371 = vstv %s370
    %vm372 = vcmp.eq.s32.totalorder %v371, 1
    %v373 = vsel %vm372, %v366, %v343
    %s374 = scalar_lea.vmem [#allocation2], 56
    %v375 = vld [vmem:[%s374] sm:$0xff]
    %376 = vmatpush.msra.mxu0 %v163
    %377 = vmatpush.msra.mxu0 %v162
    %378 = vmatpush.msra.mxu0 %v161
    %379 = vmatpush.msra.mxu0 %v160
    %380 = vmatpush.msra.mxu0 %v159
    %381 = vmatpush.msra.mxu0 %v158
    %382 = vmatpush.msra.mxu0 %v157
    %383 = vmatpush.msra.mxu0 %v156
    %384 = vmatpush.msra.mxu0 %v155
    %385 = vmatpush.msra.mxu0 %v154
    %386 = vmatpush.msra.mxu0 %v153
    %387 = vmatpush.msra.mxu0 %v152
    %388 = vmatpush.msra.mxu0 %v151
    %389 = vmatpush.msra.mxu0 %v150
    %390 = vmatpush.msra.mxu0 %v149
    %391 = vmatpush.msra.mxu0 %v148
    %392 = vmatmul.f32.gmra.mxu0 %v373
    %v393 = vpop.f32.mrf.mxu0
    %v394 = vadd.f32 0.0, %v393
    %395 = vdwg.mxu0
    %v396 = vadd.f32 %v375, %v394
    %397 = vst [vmem:[%s374] sm:$0xff] %v396
    %s398 = sadd.s32 %s164, 7
    %p399 = scmp.lt.s32.totalorder %s398, 8
    %s400 = scalar_select %p399, 1, 0
    %v401 = vstv %s400
    %vm402 = vcmp.eq.s32.totalorder %v401, 1
    %v403 = vsel %vm402, %v396, %v373
    %404 = vst [vmem:[%s6] sm:$0xff] %v403
    %v405 = vld [vmem:[#allocation2] sm:$0xff]
    %v406 = vld [vmem:[#allocation2 + $0x8] sm:$0xff]
    %v407 = vld [vmem:[#allocation2 + $0x10] sm:$0xff]
    %v408 = vld [vmem:[#allocation2 + $0x18] sm:$0xff]
    %v409 = vld [vmem:[#allocation2 + $0x20] sm:$0xff]
    %v410 = vld [vmem:[#allocation2 + $0x28] sm:$0xff]
    %v411 = vld [vmem:[#allocation2 + $0x30] sm:$0xff]
    %v412 = vld [vmem:[#allocation2 + $0x38] sm:$0xff]
    %v413 = vld [vmem:[#allocation7] sm:$0xff]
    %v414 = vld [vmem:[#allocation7 + $0x8] sm:$0xff]
    %v415 = vld [vmem:[#allocation7 + $0x10] sm:$0xff]
    %v416 = vld [vmem:[#allocation7 + $0x18] sm:$0xff]
    %v417 = vld [vmem:[#allocation7 + $0x20] sm:$0xff]
    %v418 = vld [vmem:[#allocation7 + $0x28] sm:$0xff]
    %v419 = vld [vmem:[#allocation7 + $0x30] sm:$0xff]
    %v420 = vld [vmem:[#allocation7 + $0x38] sm:$0xff]
    %v421 = vld [vmem:[#allocation7 + $0x40] sm:$0xff]
    %v422 = vld [vmem:[#allocation7 + $0x48] sm:$0xff]
    %v423 = vld [vmem:[#allocation7 + $0x50] sm:$0xff]
    %v424 = vld [vmem:[#allocation7 + $0x58] sm:$0xff]
    %v425 = vld [vmem:[#allocation7 + $0x60] sm:$0xff]
    %v426 = vld [vmem:[#allocation7 + $0x68] sm:$0xff]
    %v427 = vld [vmem:[#allocation7 + $0x70] sm:$0xff]
    %v428 = vld [vmem:[#allocation7 + $0x78] sm:$0xff]
    %429 = vmatpush.msra.mxu0 %v428
    %430 = vmatpush.msra.mxu0 %v427
    %431 = vmatpush.msra.mxu0 %v426
    %432 = vmatpush.msra.mxu0 %v425
    %433 = vmatpush.msra.mxu0 %v424
    %434 = vmatpush.msra.mxu0 %v423
    %435 = vmatpush.msra.mxu0 %v422
    %436 = vmatpush.msra.mxu0 %v421
    %437 = vmatpush.msra.mxu0 %v420
    %438 = vmatpush.msra.mxu0 %v419
    %439 = vmatpush.msra.mxu0 %v418
    %440 = vmatpush.msra.mxu0 %v417
    %441 = vmatpush.msra.mxu0 %v416
    %442 = vmatpush.msra.mxu0 %v415
    %443 = vmatpush.msra.mxu0 %v414
    %444 = vmatpush.msra.mxu0 %v413
    %445 = vmatmul.f32.gmra.mxu0 %v405
    %v446 = vpop.f32.mrf.mxu0
    %v447 = vadd.f32 0.0, %v446
    %448 = vmatmul.f32.gmra.mxu0 %v406
    %v449 = vpop.f32.mrf.mxu0
    %v450 = vadd.f32 0.0, %v449
    %451 = vmatmul.f32.gmra.mxu0 %v407
    %v452 = vpop.f32.mrf.mxu0
    %v453 = vadd.f32 0.0, %v452
    %454 = vmatmul.f32.gmra.mxu0 %v408
    %v455 = vpop.f32.mrf.mxu0
    %v456 = vadd.f32 0.0, %v455
    %457 = vmatmul.f32.gmra.mxu0 %v409
    %v458 = vpop.f32.mrf.mxu0
    %v459 = vadd.f32 0.0, %v458
    %460 = vmatmul.f32.gmra.mxu0 %v410
    %v461 = vpop.f32.mrf.mxu0
    %v462 = vadd.f32 0.0, %v461
    %463 = vmatmul.f32.gmra.mxu0 %v411
    %v464 = vpop.f32.mrf.mxu0
    %v465 = vadd.f32 0.0, %v464
    %466 = vmatmul.f32.gmra.mxu0 %v412
    %v467 = vpop.f32.mrf.mxu0
    %v468 = vadd.f32 0.0, %v467
    %469 = vdwg.mxu0
    %470 = vst [vmem:[%s5] sm:$0xff] %v447
    %471 = vst [vmem:[%s5 + $0x8] sm:$0xff] %v450
    %472 = vst [vmem:[%s5 + $0x10] sm:$0xff] %v453
    %473 = vst [vmem:[%s5 + $0x18] sm:$0xff] %v456
    %474 = vst [vmem:[%s5 + $0x20] sm:$0xff] %v459
    %475 = vst [vmem:[%s5 + $0x28] sm:$0xff] %v462
    %476 = vst [vmem:[%s5 + $0x30] sm:$0xff] %v465
    %477 = vst [vmem:[%s5 + $0x38] sm:$0xff] %v468
    // Predicated region
    $region38: #{_lambda_.1} parent=1 // pred_check
      _
    $region39: #{_lambda_.1} parent=1 // pred_check_branch
      %479 = sbr.rel (0) target = $region41
    $region40: #{_lambda_.1} parent=1 // pred_region
      _
    $region41: #{_lambda_.1} parent=1 // pred_fallthru
      _
    // Predicated region
    $region42: #{_lambda_.1} parent=1 // pred_check
      _
    $region43: #{_lambda_.1} parent=1 // pred_check_branch
      %481 = sbr.rel (0) target = $region45
    $region44: #{_lambda_.1} parent=1 // pred_region
      _
    $region45: #{_lambda_.1} parent=1 // pred_fallthru
      _
    // Predicated region
    $region46: #{_lambda_.1} parent=1 // pred_check
      _
    $region47: #{_lambda_.1} parent=1 // pred_check_branch
      %483 = sbr.rel (0) target = $region49
    $region48: #{_lambda_.1} parent=1 // pred_region
      _
    $region49: #{_lambda_.1} parent=1 // pred_fallthru
      _
    // Predicated region
    $region50: #{_lambda_.1} parent=1 // pred_check
      _
    $region51: #{_lambda_.1} parent=1 // pred_check_branch
      %485 = sbr.rel (0) target = $region53
    $region52: #{_lambda_.1} parent=1 // pred_region
      _
    $region53: #{_lambda_.1} parent=1 // pred_fallthru
      _
    %486 = vsyncpa [#allocation4], 1
    %487 = vsyncpa [#allocation6], 1

</llo_original>
